<compile_context>
chip_gen: v7x
topology: tpu7x:2x2x1
jax: 0.10.0
libtpu: 0.0.40
codegen_flags: <defaults>
</compile_context>

<pallas_src>
import functools

import jax
import jax.numpy as jnp
from jax.experimental import pallas as pl
from jax.experimental.pallas import tpu as pltpu

LANE = 128     # TPU lane width (last-dim vector width)
SUBLANE = 8    # TPU sublane width (second-to-last dim)


def actor_kernel(x_ref, w1_ref, b1_ref, w2_ref, b2_ref, w3_ref, b3_ref,
                 out_ref, *, action_bound):
    # x_ref: (TB, S) f32   weights: bf16 (in, out)   biases: f32 (1, out)
    # Cast x -> bf16 on the VPU so the MXU gets bf16 operands without an extra
    # HBM pass in the wrapper.
    x = x_ref[...].astype(jnp.bfloat16)

    # Layer 1: Linear (bf16 MXU, f32 acc) + bias/ReLU in f32
    h1 = jnp.dot(x, w1_ref[...], preferred_element_type=jnp.float32) + b1_ref[...]
    h1 = jnp.maximum(h1, 0.0)

    # Layer 2
    h2 = jnp.dot(h1.astype(jnp.bfloat16), w2_ref[...],
                 preferred_element_type=jnp.float32) + b2_ref[...]
    h2 = jnp.maximum(h2, 0.0)

    # Layer 3 + tanh * action_bound (bound is a compile-time constant)
    h3 = jnp.dot(h2.astype(jnp.bfloat16), w3_ref[...],
                 preferred_element_type=jnp.float32) + b3_ref[...]
    out_ref[...] = (jnp.tanh(h3) * action_bound).astype(out_ref.dtype)


def actor_forward(x, params, action_bound=1.0, *, block_rows=1024):
    """x: (B, state_dim) float32. params: dict of pre-transposed (in, out) weights."""
    w1, b1 = params["w1"], params["b1"]   # (S, H), (1, H)
    w2, b2 = params["w2"], params["b2"]   # (H, H), (1, H)
    w3, b3 = params["w3"], params["b3"]   # (H, A), (1, A)

    B, S = x.shape
    H = w1.shape[1]
    A = w3.shape[1]

    if B == 0:  # degenerate batch: avoid a zero-length grid
        return jnp.zeros((0, A), jnp.float32)

    def round_up(v, m):
        return ((v + m - 1) // m) * m

    # Row tile: multiple of the sublane width, capped at ceil(B/2) so batches
    # larger than a tile always produce >= 2 grid steps (v7x megacore sharding).
    TB = max(SUBLANE, min(block_rows, round_up(pl.cdiv(B, 2), SUBLANE)))
    grid = (pl.cdiv(B, TB),)   # ragged last block handled by Pallas (no x pad/copy)

    # Only the (tiny, ~13 KB) weights go to bf16 for the MXU; x streams as f32
    # and is cast in-kernel; biases stay f32 for the VPU add path.
    w1_bf = w1.astype(jnp.bfloat16)
    w2_bf = w2.astype(jnp.bfloat16)
    w3_bf = w3.astype(jnp.bfloat16)
    b1_f = b1.astype(jnp.float32)
    b2_f = b2.astype(jnp.float32)
    b3_f = b3.astype(jnp.float32)

    # Weights/biases: same (0, 0) block index every grid step -> VMEM-resident,
    # DMA'd from HBM only once.
    def resident(arr):
        return pl.BlockSpec(arr.shape, lambda i: (0, 0))

    flops = 2 * B * (S * H + H * H + H * A)
    bytes_accessed = (B * S * 4
                      + (w1_bf.size + w2_bf.size + w3_bf.size) * 2
                      + (b1_f.size + b2_f.size + b3_f.size) * 4
                      + B * A * 4)

    kernel = functools.partial(actor_kernel, action_bound=float(action_bound))

    out = pl.pallas_call(
        kernel,
        out_shape=jax.ShapeDtypeStruct((B, A), jnp.float32),
        grid=grid,
        in_specs=[
            pl.BlockSpec((TB, S), lambda i: (i, 0)),   # x: row-tiled, pipelined
            resident(w1_bf), resident(b1_f),
            resident(w2_bf), resident(b2_f),
            resident(w3_bf), resident(b3_f),
        ],
        # Unpadded output block: last dim A equals the full array dim (legal),
        # so the writeback is exactly the useful bytes and no wrapper slice is
        # needed afterwards.
        out_specs=pl.BlockSpec((TB, A), lambda i: (i, 0)),
        compiler_params=pltpu.CompilerParams(
            dimension_semantics=("parallel",),         # megacore sharding on v7x
        ),
        cost_estimate=pl.CostEstimate(
            flops=flops,
            transcendentals=B * A,                     # tanh
            bytes_accessed=bytes_accessed,
        ),
    )(x.astype(jnp.float32), w1_bf, b1_f, w2_bf, b2_f, w3_bf, b3_f)

    return out


def init_actor_params(key, state_dim, action_dim, hidden_dim=64):
    """Deterministic synthetic init. Weights are stored as (in, out) = W^T."""
    k1, k2, k3, k4, k5, k6 = jax.random.split(key, 6)
    scale = 0.1
    return {
        "w1": scale * jax.random.normal(k1, (state_dim, hidden_dim), jnp.float32),
        "b1": scale * jax.random.normal(k2, (1, hidden_dim), jnp.float32),
        "w2": scale * jax.random.normal(k3, (hidden_dim, hidden_dim), jnp.float32),
        "b2": scale * jax.random.normal(k4, (1, hidden_dim), jnp.float32),
        "w3": scale * jax.random.normal(k5, (hidden_dim, action_dim), jnp.float32),
        "b3": scale * jax.random.normal(k6, (1, action_dim), jnp.float32),
    }


def actor_reference(x, params, action_bound=1.0):
    h1 = jnp.maximum(x @ params["w1"] + params["b1"], 0.0)
    h2 = jnp.maximum(h1 @ params["w2"] + params["b2"], 0.0)
    return jnp.tanh(h2 @ params["w3"] + params["b3"]) * action_bound


if __name__ == "__main__":
    state_dim = 8
    action_dim = 4
    hidden_dim = 64
    action_bound = 1.0

    key = jax.random.PRNGKey(0)
    kx, kp, kx2 = jax.random.split(key, 3)
    params = init_actor_params(kp, state_dim, action_dim, hidden_dim)

    # Small batch (ragged single-step grid).
    batch = 2
    x = jax.random.normal(kx, (batch, state_dim), jnp.float32)
    out = jax.block_until_ready(actor_forward(x, params, action_bound))
    ref = actor_reference(x, params, action_bound)
    assert out.shape == (batch, action_dim), out.shape
    # bf16 matmul inputs with f32 accumulation -> loosened tolerance vs f32 reference.
    assert jnp.allclose(out, ref, atol=2e-2, rtol=2e-2), "mismatch vs reference (B=2)"

    # Larger, non-tile-multiple batch: exercises >=2 parallel grid steps and the
    # ragged last block with no wrapper-side padding/slicing.
    batch2 = 600
    x2 = jax.random.normal(kx2, (batch2, state_dim), jnp.float32)
    out2 = jax.block_until_ready(actor_forward(x2, params, action_bound))
    ref2 = actor_reference(x2, params, action_bound)
    assert out2.shape == (batch2, action_dim), out2.shape
    assert jnp.allclose(out2, ref2, atol=2e-2, rtol=2e-2), "mismatch vs reference (B=600)"

    print("KERNEL_OK")
</pallas_src>

<mosaic_0001>
module attributes {stable_mosaic.version = 11 : i64} {
  func.func @actor_kernel(%arg0: i32, %arg1: memref<8x8xf32, #tpu.memory_space<vmem>>, %arg2: memref<8x64xbf16, #tpu.memory_space<vmem>>, %arg3: memref<1x64xf32, #tpu.memory_space<vmem>>, %arg4: memref<64x64xbf16, #tpu.memory_space<vmem>>, %arg5: memref<1x64xf32, #tpu.memory_space<vmem>>, %arg6: memref<64x4xbf16, #tpu.memory_space<vmem>>, %arg7: memref<1x4xf32, #tpu.memory_space<vmem>>, %arg8: memref<8x4xf32, #tpu.memory_space<vmem>>) attributes {dimension_semantics = [#tpu.dimension_semantics<parallel>], iteration_bounds = array<i64: 1>, scalar_prefetch = 0 : i64, scratch_operands = 0 : i64, tpu.core_type = #tpu.core_type<tc>, window_params = [{transform_indices = @transform_0, window_bounds = array<i64: 8, 8>}, {pipeline_mode = #tpu.pipeline_mode<synchronous>, transform_indices = @transform_1, window_bounds = array<i64: 8, 64>}, {pipeline_mode = #tpu.pipeline_mode<synchronous>, transform_indices = @transform_2, window_bounds = array<i64: 1, 64>}, {pipeline_mode = #tpu.pipeline_mode<synchronous>, transform_indices = @transform_3, window_bounds = array<i64: 64, 64>}, {pipeline_mode = #tpu.pipeline_mode<synchronous>, transform_indices = @transform_4, window_bounds = array<i64: 1, 64>}, {pipeline_mode = #tpu.pipeline_mode<synchronous>, transform_indices = @transform_5, window_bounds = array<i64: 64, 4>}, {pipeline_mode = #tpu.pipeline_mode<synchronous>, transform_indices = @transform_6, window_bounds = array<i64: 1, 4>}, {transform_indices = @transform_7, window_bounds = array<i64: 8, 4>}]} {
    %c0 = arith.constant 0 : index
    %c0_0 = arith.constant 0 : index
    %0 = vector.load %arg1[%c0, %c0_0] : memref<8x8xf32, #tpu.memory_space<vmem>>, vector<8x8xf32>
    %1 = arith.truncf %0 : vector<8x8xf32> to vector<8x8xbf16>
    %c0_1 = arith.constant 0 : index
    %c0_2 = arith.constant 0 : index
    %2 = vector.load %arg2[%c0_1, %c0_2] : memref<8x64xbf16, #tpu.memory_space<vmem>>, vector<8x64xbf16>
    %cst = arith.constant dense<0.000000e+00> : vector<8x64xf32>
    %3 = tpu.matmul %1, %2, %cst {dimension_numbers = #tpu.dot_dimension_numbers<[1], [0], [0], [1], [0, 0, 1, 1], [], []>} : vector<8x8xbf16>, vector<8x64xbf16>, vector<8x64xf32> -> vector<8x64xf32>
    %c0_3 = arith.constant 0 : index
    %c0_4 = arith.constant 0 : index
    %4 = vector.load %arg3[%c0_3, %c0_4] : memref<1x64xf32, #tpu.memory_space<vmem>>, vector<1x64xf32>
    %5 = vector.broadcast %4 : vector<1x64xf32> to vector<8x64xf32>
    %6 = arith.addf %3, %5 : vector<8x64xf32>
    %cst_5 = arith.constant 0.000000e+00 : f32
    %7 = vector.broadcast %cst_5 : f32 to vector<8x64xf32>
    %8 = arith.maximumf %6, %7 : vector<8x64xf32>
    %9 = arith.truncf %8 : vector<8x64xf32> to vector<8x64xbf16>
    %c0_6 = arith.constant 0 : index
    %c0_7 = arith.constant 0 : index
    %10 = vector.load %arg4[%c0_6, %c0_7] : memref<64x64xbf16, #tpu.memory_space<vmem>>, vector<64x64xbf16>
    %cst_8 = arith.constant dense<0.000000e+00> : vector<8x64xf32>
    %11 = tpu.matmul %9, %10, %cst_8 {dimension_numbers = #tpu.dot_dimension_numbers<[1], [0], [0], [1], [0, 0, 1, 1], [], []>} : vector<8x64xbf16>, vector<64x64xbf16>, vector<8x64xf32> -> vector<8x64xf32>
    %c0_9 = arith.constant 0 : index
    %c0_10 = arith.constant 0 : index
    %12 = vector.load %arg5[%c0_9, %c0_10] : memref<1x64xf32, #tpu.memory_space<vmem>>, vector<1x64xf32>
    %13 = vector.broadcast %12 : vector<1x64xf32> to vector<8x64xf32>
    %14 = arith.addf %11, %13 : vector<8x64xf32>
    %cst_11 = arith.constant 0.000000e+00 : f32
    %15 = vector.broadcast %cst_11 : f32 to vector<8x64xf32>
    %16 = arith.maximumf %14, %15 : vector<8x64xf32>
    %17 = arith.truncf %16 : vector<8x64xf32> to vector<8x64xbf16>
    %c0_12 = arith.constant 0 : index
    %c0_13 = arith.constant 0 : index
    %18 = vector.load %arg6[%c0_12, %c0_13] : memref<64x4xbf16, #tpu.memory_space<vmem>>, vector<64x4xbf16>
    %cst_14 = arith.constant dense<0.000000e+00> : vector<8x4xf32>
    %19 = tpu.matmul %17, %18, %cst_14 {dimension_numbers = #tpu.dot_dimension_numbers<[1], [0], [0], [1], [0, 0, 1, 1], [], []>} : vector<8x64xbf16>, vector<64x4xbf16>, vector<8x4xf32> -> vector<8x4xf32>
    %c0_15 = arith.constant 0 : index
    %c0_16 = arith.constant 0 : index
    %20 = vector.load %arg7[%c0_15, %c0_16] : memref<1x4xf32, #tpu.memory_space<vmem>>, vector<1x4xf32>
    %21 = vector.broadcast %20 : vector<1x4xf32> to vector<8x4xf32>
    %22 = arith.addf %19, %21 : vector<8x4xf32>
    %23 = math.tanh %22 : vector<8x4xf32>
    %cst_17 = arith.constant 1.000000e+00 : f32
    %24 = vector.broadcast %cst_17 : f32 to vector<8x4xf32>
    %25 = arith.mulf %23, %24 : vector<8x4xf32>
    %c0_18 = arith.constant 0 : index
    %c0_19 = arith.constant 0 : index
    %26 = vector.load %arg8[%c0_18, %c0_19] : memref<8x4xf32, #tpu.memory_space<vmem>>, vector<8x4xf32>
    tpu.vector_store %arg8[%c0_18, %c0_19], %25 {strides = array<i32>} : memref<8x4xf32, #tpu.memory_space<vmem>>, vector<8x4xf32>,
    return
  }
  func.func @transform_0(%arg0: i32) -> (i32, i32) {
    %c0_i32 = arith.constant 0 : i32
    %c0_i32_0 = arith.constant 0 : i32
    return %arg0, %c0_i32 : i32, i32
  }
  func.func @transform_1(%arg0: i32) -> (i32, i32) {
    %c0_i32 = arith.constant 0 : i32
    %c0_i32_0 = arith.constant 0 : i32
    %c0_i32_1 = arith.constant 0 : i32
    return %c0_i32, %c0_i32_0 : i32, i32
  }
  func.func @transform_2(%arg0: i32) -> (i32, i32) {
    %c0_i32 = arith.constant 0 : i32
    %c0_i32_0 = arith.constant 0 : i32
    %c0_i32_1 = arith.constant 0 : i32
    return %c0_i32, %c0_i32_0 : i32, i32
  }
  func.func @transform_3(%arg0: i32) -> (i32, i32) {
    %c0_i32 = arith.constant 0 : i32
    %c0_i32_0 = arith.constant 0 : i32
    %c0_i32_1 = arith.constant 0 : i32
    return %c0_i32, %c0_i32_0 : i32, i32
  }
  func.func @transform_4(%arg0: i32) -> (i32, i32) {
    %c0_i32 = arith.constant 0 : i32
    %c0_i32_0 = arith.constant 0 : i32
    %c0_i32_1 = arith.constant 0 : i32
    return %c0_i32, %c0_i32_0 : i32, i32
  }
  func.func @transform_5(%arg0: i32) -> (i32, i32) {
    %c0_i32 = arith.constant 0 : i32
    %c0_i32_0 = arith.constant 0 : i32
    %c0_i32_1 = arith.constant 0 : i32
    return %c0_i32, %c0_i32_0 : i32, i32
  }
  func.func @transform_6(%arg0: i32) -> (i32, i32) {
    %c0_i32 = arith.constant 0 : i32
    %c0_i32_0 = arith.constant 0 : i32
    %c0_i32_1 = arith.constant 0 : i32
    return %c0_i32, %c0_i32_0 : i32, i32
  }
  func.func @transform_7(%arg0: i32) -> (i32, i32) {
    %c0_i32 = arith.constant 0 : i32
    %c0_i32_0 = arith.constant 0 : i32
    return %arg0, %c0_i32 : i32, i32
  }
}

</mosaic_0001>

<llo_original>
// kernel: tpu_custom_call.1
$region0: #{tpu_custom_call.1}
  #allocation0 [shape = 'u32[]', space=smem, size = 0x4, offset = 0x4, fixed_abs, tag = 'smem constant byte address 0x4 - core index']
  #allocation1 [shape = 'u32[144,128]{1,0:T(1,128)}', space=vmem, size = 0x12000, scoped, tag = 'internal scratch']
  %s0 = inlined_call_operand.vmem [shape: f32[2,8], index: 0, kind: input, shape index: {}]
  %s1 = inlined_call_operand.vmem [shape: bf16[8,64], index: 1, kind: input, shape index: {}]
  %s2 = inlined_call_operand.vmem [shape: f32[1,64], index: 2, kind: input, shape index: {}]
  %s3 = inlined_call_operand.vmem [shape: bf16[64,64], index: 3, kind: input, shape index: {}]
  %s4 = inlined_call_operand.vmem [shape: f32[1,64], index: 4, kind: input, shape index: {}]
  %s5 = inlined_call_operand.vmem [shape: bf16[64,4], index: 5, kind: input, shape index: {}]
  %s6 = inlined_call_operand.vmem [shape: f32[1,4], index: 6, kind: input, shape index: {}]
  %s7 = inlined_call_operand.hbm [shape: f32[2,4], index: 7, kind: output, shape index: {}]
  %s8 = sld [smem:[#allocation0]]
  $region38: #{tpu_custom_call.1} parent=0
    _
  %s10 = ssub.s32 1, %s8
  %s11 = scalar_select 0, %s10, %s8
  $region1: #{tpu_custom_call.1} parent=0
    #allocation2 [shape = 'u8[4096]{0}', space=vmem, size = 0x1000, scoped, tag = 'output window, operand 0, single buffered']
    #allocation3 [shape = 's32[1]{0}', space=sflag, size = 0x4, scoped, tag = 'scoped memory for tpu_custom_call.1']
    %12 = vsyncpa [#allocation3], 0
    // Predicated region
    $region2: #{tpu_custom_call.1} parent=1 // pred_check
      _
    $region3: #{tpu_custom_call.1} parent=1 // pred_check_branch
      %14 = sbr.rel (0) target = $region5
    $region4: #{tpu_custom_call.1} parent=1 // pred_region
      _
    $region5: #{tpu_custom_call.1} parent=1 // pred_fallthru
      _
    // Predicated region
    $region6: #{tpu_custom_call.1} parent=1 // pred_check
      _
    $region7: #{tpu_custom_call.1} parent=1 // pred_check_branch
      %16 = sbr.rel (0) target = $region9
    $region8: #{tpu_custom_call.1} parent=1 // pred_region
      _
    $region9: #{tpu_custom_call.1} parent=1 // pred_fallthru
      _
    // Predicated region
    $region10: #{tpu_custom_call.1} parent=1 // pred_check
      _
    $region11: #{tpu_custom_call.1} parent=1 // pred_check_branch
      %18 = sbr.rel (0) target = $region13
    $region12: #{tpu_custom_call.1} parent=1 // pred_region
      _
    $region13: #{tpu_custom_call.1} parent=1 // pred_fallthru
      _
    // Predicated region
    $region14: #{tpu_custom_call.1} parent=1 // pred_check
      _
    $region15: #{tpu_custom_call.1} parent=1 // pred_check_branch
      %20 = sbr.rel (0) target = $region17
    $region16: #{tpu_custom_call.1} parent=1 // pred_region
      _
    $region17: #{tpu_custom_call.1} parent=1 // pred_fallthru
      _
    // Predicated region
    $region18: #{tpu_custom_call.1} parent=1 // pred_check
      _
    $region19: #{tpu_custom_call.1} parent=1 // pred_check_branch
      %22 = sbr.rel (0) target = $region21
    $region20: #{tpu_custom_call.1} parent=1 // pred_region
      _
    $region21: #{tpu_custom_call.1} parent=1 // pred_fallthru
      _
    // Predicated region
    $region22: #{tpu_custom_call.1} parent=1 // pred_check
      _
    $region23: #{tpu_custom_call.1} parent=1 // pred_check_branch
      %24 = sbr.rel (0) target = $region25
    $region24: #{tpu_custom_call.1} parent=1 // pred_region
      _
    $region25: #{tpu_custom_call.1} parent=1 // pred_fallthru
      _
    // Predicated region
    $region26: #{tpu_custom_call.1} parent=1 // pred_check
      _
    $region27: #{tpu_custom_call.1} parent=1 // pred_check_branch
      %26 = sbr.rel (0) target = $region29
    $region28: #{tpu_custom_call.1} parent=1 // pred_region
      _
    $region29: #{tpu_custom_call.1} parent=1 // pred_fallthru
      _
    %v28 = vld [vmem:[%s0] sm:$0xff]
    %v29 = vpack.c.bf16 %v28, %v28
    %v30 = vld [vmem:[%s1] sm:$0xf]
    %v31 = vld [vmem:[%s2] sm:$0x1]
    %v33 = vlaneseq
    %v34 = vshrl.u32 %v33, 7
    %v35 = vsub.s32 0, %v34
    %v36 = vrot.slane %v31, %v35
    %vm38 = vcmask 64512
    %v40 = vsel %vm38, %v29, 0
    %vm42 = vcmask 1043456
    %v44 = vsel %vm42, %v30, 0
    %46 = vmatprep.subr.bf16.mxu0 0
    %47 = vmatpush1.bf16.msra.mxu0 %v44
    %48 = vmatprep.subr.bf16.mxu0 0
    %49 = vmatpush1.bf16.msra.mxu0 0
    %50 = vmatprep.subr.bf16.mxu0 0
    %51 = vmatpush1.bf16.msra.mxu0 0
    %52 = vmatprep.subr.bf16.mxu0 0
    %53 = vmatpush1.bf16.msra.mxu0 0
    %54 = vmatprep.subr.bf16.mxu0 0
    %55 = vmatpush1.bf16.msra.mxu0 0
    %56 = vmatprep.subr.bf16.mxu0 0
    %57 = vmatpush1.bf16.msra.mxu0 0
    %58 = vmatprep.subr.bf16.mxu0 0
    %59 = vmatpush1.bf16.msra.mxu0 0
    %60 = vmatprep.subr.bf16.mxu0 0
    %61 = vmatpush1.bf16.msra.mxu0 0
    %62 = vmatprep.subr.bf16.mxu0 0
    %63 = vmatpush1.bf16.msra.mxu0 0
    %64 = vmatprep.subr.bf16.mxu0 0
    %65 = vmatpush1.bf16.msra.mxu0 0
    %66 = vmatprep.subr.bf16.mxu0 0
    %67 = vmatpush1.bf16.msra.mxu0 0
    %68 = vmatprep.subr.bf16.mxu0 0
    %69 = vmatpush1.bf16.msra.mxu0 0
    %70 = vmatprep.subr.bf16.mxu0 0
    %71 = vmatpush1.bf16.msra.mxu0 0
    %72 = vmatprep.subr.bf16.mxu0 0
    %73 = vmatpush1.bf16.msra.mxu0 0
    %74 = vmatprep.subr.bf16.mxu0 0
    %75 = vmatpush1.bf16.msra.mxu0 0
    %76 = vmatprep.subr.bf16.mxu0 0
    %77 = vmatpush1.bf16.msra.mxu0 0
    %78 = vmatprep.mubr.bf16.mxu0 0
    %79 = vmatmul.mubr.bf16.gmra.mrb[0].mxu0 %v40
    %v80 = vpop.f32.mrb[0].mxu0
    %v81 = vadd.f32 %v36, %v80
    %v82 = vpop.f32.mrb[0].mxu0
    %v83 = vpop.f32.mrb[0].mxu0
    %v84 = vpop.f32.mrb[0].mxu0
    %85 = vdwg.mxu0
    %v86 = vmax.f32 %v81, 0.0
    %v87 = vpack.c.bf16 %v86, %v86
    %v88 = vld [vmem:[%s3] sm:$0xf]
    %v89 = vld [vmem:[%s3 + $0x4] sm:$0xf]
    %v90 = vld [vmem:[%s3 + $0x8] sm:$0xf]
    %v91 = vld [vmem:[%s3 + $0xc] sm:$0xf]
    %v92 = vld [vmem:[%s3 + $0x10] sm:$0xf]
    %v93 = vld [vmem:[%s3 + $0x14] sm:$0xf]
    %v94 = vld [vmem:[%s3 + $0x18] sm:$0xf]
    %v95 = vld [vmem:[%s3 + $0x1c] sm:$0xf]
    %v96 = vld [vmem:[%s4] sm:$0x1]
    %v98 = vlaneseq
    %v99 = vshrl.u32 %v98, 7
    %v100 = vsub.s32 0, %v99
    %v101 = vrot.slane %v96, %v100
    %v111 = vunpack.c.l.b16 %v88
    %v112 = vunpack.c.l.b16 %v89
    %v113 = vunpack.c.l.b16 %v90
    %v114 = vunpack.c.l.b16 %v91
    %v115 = vunpack.c.l.b16 %v92
    %v116 = vunpack.c.l.b16 %v93
    %v117 = vunpack.c.l.b16 %v94
    %v118 = vunpack.c.l.b16 %v95
    %v119 = vpack.c.b16 %v112, %v111
    %v120 = vpack.c.b16 %v114, %v113
    %v121 = vpack.c.b16 %v116, %v115
    %v122 = vpack.c.b16 %v118, %v117
    %vm127 = vcmask 523264
    %v129 = vsel %vm127, %v87, 0
    %131 = vmatprep.subr.bf16.mxu0 0
    %132 = vmatpush1.bf16.msra.mxu0 %v119
    %133 = vmatprep.subr.bf16.mxu0 0
    %134 = vmatpush1.bf16.msra.mxu0 %v120
    %135 = vmatprep.subr.bf16.mxu0 0
    %136 = vmatpush1.bf16.msra.mxu0 %v121
    %137 = vmatprep.subr.bf16.mxu0 0
    %138 = vmatpush1.bf16.msra.mxu0 %v122
    %139 = vmatprep.subr.bf16.mxu0 0
    %140 = vmatpush1.bf16.msra.mxu0 0
    %141 = vmatprep.subr.bf16.mxu0 0
    %142 = vmatpush1.bf16.msra.mxu0 0
    %143 = vmatprep.subr.bf16.mxu0 0
    %144 = vmatpush1.bf16.msra.mxu0 0
    %145 = vmatprep.subr.bf16.mxu0 0
    %146 = vmatpush1.bf16.msra.mxu0 0
    %147 = vmatprep.subr.bf16.mxu0 0
    %148 = vmatpush1.bf16.msra.mxu0 0
    %149 = vmatprep.subr.bf16.mxu0 0
    %150 = vmatpush1.bf16.msra.mxu0 0
    %151 = vmatprep.subr.bf16.mxu0 0
    %152 = vmatpush1.bf16.msra.mxu0 0
    %153 = vmatprep.subr.bf16.mxu0 0
    %154 = vmatpush1.bf16.msra.mxu0 0
    %155 = vmatprep.subr.bf16.mxu0 0
    %156 = vmatpush1.bf16.msra.mxu0 0
    %157 = vmatprep.subr.bf16.mxu0 0
    %158 = vmatpush1.bf16.msra.mxu0 0
    %159 = vmatprep.subr.bf16.mxu0 0
    %160 = vmatpush1.bf16.msra.mxu0 0
    %161 = vmatprep.subr.bf16.mxu0 0
    %162 = vmatpush1.bf16.msra.mxu0 0
    %163 = vmatprep.mubr.bf16.mxu0 0
    %164 = vmatmul.mubr.bf16.gmra.mrb[0].mxu0 %v129
    %v165 = vpop.f32.mrb[0].mxu0
    %v166 = vadd.f32 %v101, %v165
    %v167 = vpop.f32.mrb[0].mxu0
    %v168 = vpop.f32.mrb[0].mxu0
    %v169 = vpop.f32.mrb[0].mxu0
    %170 = vdwg.mxu0
    %v171 = vmax.f32 %v166, 0.0
    %v172 = vpack.c.bf16 %v171, %v171
    %v173 = vld [vmem:[%s5] sm:$0xf]
    %v174 = vld [vmem:[%s5 + $0x4] sm:$0xf]
    %v175 = vld [vmem:[%s5 + $0x8] sm:$0xf]
    %v176 = vld [vmem:[%s5 + $0xc] sm:$0xf]
    %v177 = vld [vmem:[%s5 + $0x10] sm:$0xf]
    %v178 = vld [vmem:[%s5 + $0x14] sm:$0xf]
    %v179 = vld [vmem:[%s5 + $0x18] sm:$0xf]
    %v180 = vld [vmem:[%s5 + $0x1c] sm:$0xf]
    %v181 = vld [vmem:[%s6] sm:$0x1]
    %v183 = vlaneseq
    %v184 = vshrl.u32 %v183, 7
    %v185 = vsub.s32 0, %v184
    %v186 = vrot.slane %v181, %v185
    %v196 = vunpack.c.l.b16 %v173
    %v197 = vunpack.c.l.b16 %v174
    %v198 = vunpack.c.l.b16 %v175
    %v199 = vunpack.c.l.b16 %v176
    %v200 = vunpack.c.l.b16 %v177
    %v201 = vunpack.c.l.b16 %v178
    %v202 = vunpack.c.l.b16 %v179
    %v203 = vunpack.c.l.b16 %v180
    %v204 = vpack.c.b16 %v197, %v196
    %v205 = vpack.c.b16 %v199, %v198
    %v206 = vpack.c.b16 %v201, %v200
    %v207 = vpack.c.b16 %v203, %v202
    %v213 = vsel %vm127, %v172, 0
    %215 = vmatprep.subr.bf16.mxu0 0
    %216 = vmatpush1.bf16.msra.mxu0 %v204
    %217 = vmatprep.subr.bf16.mxu0 0
    %218 = vmatpush1.bf16.msra.mxu0 %v205
    %219 = vmatprep.subr.bf16.mxu0 0
    %220 = vmatpush1.bf16.msra.mxu0 %v206
    %221 = vmatprep.subr.bf16.mxu0 0
    %222 = vmatpush1.bf16.msra.mxu0 %v207
    %223 = vmatprep.subr.bf16.mxu0 0
    %224 = vmatpush1.bf16.msra.mxu0 0
    %225 = vmatprep.subr.bf16.mxu0 0
    %226 = vmatpush1.bf16.msra.mxu0 0
    %227 = vmatprep.subr.bf16.mxu0 0
    %228 = vmatpush1.bf16.msra.mxu0 0
    %229 = vmatprep.subr.bf16.mxu0 0
    %230 = vmatpush1.bf16.msra.mxu0 0
    %231 = vmatprep.subr.bf16.mxu0 0
    %232 = vmatpush1.bf16.msra.mxu0 0
    %233 = vmatprep.subr.bf16.mxu0 0
    %234 = vmatpush1.bf16.msra.mxu0 0
    %235 = vmatprep.subr.bf16.mxu0 0
    %236 = vmatpush1.bf16.msra.mxu0 0
    %237 = vmatprep.subr.bf16.mxu0 0
    %238 = vmatpush1.bf16.msra.mxu0 0
    %239 = vmatprep.subr.bf16.mxu0 0
    %240 = vmatpush1.bf16.msra.mxu0 0
    %241 = vmatprep.subr.bf16.mxu0 0
    %242 = vmatpush1.bf16.msra.mxu0 0
    %243 = vmatprep.subr.bf16.mxu0 0
    %244 = vmatpush1.bf16.msra.mxu0 0
    %245 = vmatprep.subr.bf16.mxu0 0
    %246 = vmatpush1.bf16.msra.mxu0 0
    %247 = vmatprep.mubr.bf16.mxu0 0
    %248 = vmatmul.mubr.bf16.gmra.mrb[0].mxu0 %v213
    %v249 = vpop.f32.mrb[0].mxu0
    %v250 = vadd.f32 %v186, %v249
    %v251 = vpop.f32.mrb[0].mxu0
    %v252 = vpop.f32.mrb[0].mxu0
    %v253 = vpop.f32.mrb[0].mxu0
    %254 = vdwg.mxu0
    %v255 = vtanh.pop %v250
    %vm256 = vcmask 31744
    %257 = vst.msk [vmem:[#allocation2] sm:$0xff] %vm256, %v255
    // Predicated region
    $region30: #{tpu_custom_call.1} parent=1 // pred_check
      _
    $region31: #{tpu_custom_call.1} parent=1 // pred_check_branch
      %259 = sbr.rel (0) target = $region33
    $region32: #{tpu_custom_call.1} parent=1 // pred_region
      %s261 = ssub.s32 128, 32
      %262 = vsyncadd [#allocation3], %s261
      %s263 = sshll.u32 [#allocation2], 4
      %s264 = int_to_ptr.vmem [resolvable:$true] %s263
      %269 = dma.vmem_to_hbm [thread:$0]  %s264, 32, %s7, [#allocation3], 32, 32, 2
    $region33: #{tpu_custom_call.1} parent=1 // pred_fallthru
      _
    // Predicated region
    $region34: #{tpu_custom_call.1} parent=1 // pred_check
      _
    $region35: #{tpu_custom_call.1} parent=1 // pred_check_branch
      %271 = sbr.rel (0) target = $region37
    $region36: #{tpu_custom_call.1} parent=1 // pred_region
      %272 = dma.done [#allocation3], 128
    $region37: #{tpu_custom_call.1} parent=1 // pred_fallthru
      _
    %273 = vsyncpa [#allocation3], 1

</llo_original>
